<compile_context>
chip_gen: v5e
topology: v5e:2x2
jax: 0.10.0
libtpu: 0.0.40
codegen_flags: <defaults>
</compile_context>

<pallas_src>
import jax
import jax.numpy as jnp
from jax.experimental import pallas as pl
from jax.experimental.pallas import tpu as pltpu


def masked_fill_kernel(x_ref, y_ref, o_ref):
    x = x_ref[...]
    y = y_ref[...]
    # masked_fill(mask=x>y, value=2)  ->  where(x > y, 2, x)
    o_ref[...] = jnp.where(x > y, jnp.asarray(2, dtype=x.dtype), x)


def masked_fill(x, y):
    assert x.shape == y.shape and x.dtype == y.dtype
    orig_shape = x.shape

    total = 1
    for d in orig_shape:
        total *= d

    # Lane-dense 2D view: put 128 on the lane axis when possible.
    if total % 128 == 0:
        rows, lane = total // 128, 128
    else:
        lane = orig_shape[-1]
        rows = total // lane

    x2 = x.reshape(rows, lane)
    y2 = y.reshape(rows, lane)

    out2 = pl.pallas_call(
        masked_fill_kernel,
        out_shape=jax.ShapeDtypeStruct((rows, lane), x.dtype),
        in_specs=[
            pl.BlockSpec(memory_space=pltpu.MemorySpace.VMEM),
            pl.BlockSpec(memory_space=pltpu.MemorySpace.VMEM),
        ],
        out_specs=pl.BlockSpec(memory_space=pltpu.MemorySpace.VMEM),
    )(x2, y2)
    return out2.reshape(orig_shape)


if __name__ == "__main__":
    key = jax.random.PRNGKey(0)
    kx, ky = jax.random.split(key)
    shape = (2, 4, 16, 16)  # (N, C, H, W)
    x = jax.random.normal(kx, shape, dtype=jnp.float32)
    y = jax.random.normal(ky, shape, dtype=jnp.float32)

    out = masked_fill(x, y)
    jax.block_until_ready(out)

    # Reference check (plain JAX)
    ref = jnp.where(x > y, jnp.float32(2), x)
    assert out.shape == shape
    assert out.dtype == jnp.float32
    assert jnp.array_equal(out, ref)

    print("KERNEL_OK")
</pallas_src>

<mosaic_0001>
module attributes {stable_mosaic.version = 11 : i64} {
  func.func @masked_fill_kernel(%arg0: memref<16x128xf32, #tpu.memory_space<vmem>>, %arg1: memref<16x128xf32, #tpu.memory_space<vmem>>, %arg2: memref<16x128xf32, #tpu.memory_space<vmem>>) attributes {dimension_semantics = [], scalar_prefetch = 0 : i64, scratch_operands = 0 : i64, tpu.core_type = #tpu.core_type<tc>} {
    %c0 = arith.constant 0 : index
    %c0_0 = arith.constant 0 : index
    %0 = vector.load %arg0[%c0, %c0_0] : memref<16x128xf32, #tpu.memory_space<vmem>>, vector<16x128xf32>
    %c0_1 = arith.constant 0 : index
    %c0_2 = arith.constant 0 : index
    %1 = vector.load %arg1[%c0_1, %c0_2] : memref<16x128xf32, #tpu.memory_space<vmem>>, vector<16x128xf32>
    %2 = arith.cmpf ogt, %0, %1 : vector<16x128xf32>
    %cst = arith.constant 2.000000e+00 : f32
    %3 = vector.broadcast %cst : f32 to vector<16x128xf32>
    %4 = arith.select %2, %3, %0 : vector<16x128xi1>, vector<16x128xf32>
    %c0_3 = arith.constant 0 : index
    %c0_4 = arith.constant 0 : index
    %5 = vector.load %arg2[%c0_3, %c0_4] : memref<16x128xf32, #tpu.memory_space<vmem>>, vector<16x128xf32>
    tpu.vector_store %arg2[%c0_3, %c0_4], %4 {strides = array<i32>} : memref<16x128xf32, #tpu.memory_space<vmem>>, vector<16x128xf32>,
    return
  }
}

</mosaic_0001>

<llo_original>
// kernel: tpu_custom_call.1
$region0: #{tpu_custom_call.1}
  #allocation0 [shape = 'u32[]', space=smem, size = 0x4, offset = 0x4, fixed_abs, tag = 'smem constant byte address 0x4 - core index']
  #allocation1 [shape = 'u32[72,128]{1,0:T(1,128)}', space=vmem, size = 0x9000, scoped, tag = 'internal scratch']
  %s0 = inlined_call_operand.hbm [shape: f32[16,128], index: 0, kind: input, shape index: {}]
  %s1 = inlined_call_operand.hbm [shape: f32[16,128], index: 1, kind: input, shape index: {}]
  %s2 = inlined_call_operand.hbm [shape: f32[16,128], index: 2, kind: output, shape index: {}]
  %s3 = sld [smem:[#allocation0]]
  $region26: #{tpu_custom_call.1} parent=0
    _
  %s5 = ssub.s32 1, %s3
  %s6 = scalar_select 0, %s5, %s3
  $region1: #{tpu_custom_call.1} parent=0
    #allocation2 [shape = 'u8[8192]{0}', space=vmem, size = 0x2000, scoped, tag = 'input window, operand 0, single buffered']
    #allocation3 [shape = 's32[1]{0}', space=sflag, size = 0x4, scoped, tag = 'scoped memory for tpu_custom_call.1']
    #allocation4 [shape = 's32[1]{0}', space=sflag, size = 0x4, scoped, tag = 'scoped memory for tpu_custom_call.1']
    #allocation5 [shape = 'u8[8192]{0}', space=vmem, size = 0x2000, scoped, tag = 'input window, operand 1, single buffered']
    #allocation6 [shape = 's32[1]{0}', space=sflag, size = 0x4, scoped, tag = 'scoped memory for tpu_custom_call.1']
    #allocation7 [shape = 'u8[8192]{0}', space=vmem, size = 0x2000, scoped, tag = 'output window, operand 0, single buffered']
    %7 = vsyncpa [#allocation3], 0
    %8 = vsyncpa [#allocation6], 0
    %9 = vsyncpa [#allocation4], 0
    // Predicated region
    $region2: #{tpu_custom_call.1} parent=1 // pred_check
      _
    $region3: #{tpu_custom_call.1} parent=1 // pred_check_branch
      %11 = sbr.rel (0) target = $region5
    $region4: #{tpu_custom_call.1} parent=1 // pred_region
      %13 = vsyncadd [#allocation3], 0
      %s14 = sshll.u32 %s0, 4
      %s15 = int_to_ptr.hbm [resolvable:$true] %s14
      %s16 = sshll.u32 [#allocation2], 4
      %s17 = int_to_ptr.vmem [resolvable:$true] %s16
      %22 = dma.hbm_to_vmem [thread:$0]  %s15, 256, %s17, [#allocation3], 128, 128, 8
    $region5: #{tpu_custom_call.1} parent=1 // pred_fallthru
      _
    // Predicated region
    $region6: #{tpu_custom_call.1} parent=1 // pred_check
      _
    $region7: #{tpu_custom_call.1} parent=1 // pred_check_branch
      %24 = sbr.rel (0) target = $region9
    $region8: #{tpu_custom_call.1} parent=1 // pred_region
      %26 = vsyncadd [#allocation6], 0
      %s27 = sshll.u32 %s1, 4
      %s28 = int_to_ptr.hbm [resolvable:$true] %s27
      %s29 = sshll.u32 [#allocation5], 4
      %s30 = int_to_ptr.vmem [resolvable:$true] %s29
      %35 = dma.hbm_to_vmem [thread:$0]  %s28, 256, %s30, [#allocation6], 128, 128, 8
    $region9: #{tpu_custom_call.1} parent=1 // pred_fallthru
      _
    // Predicated region
    $region10: #{tpu_custom_call.1} parent=1 // pred_check
      _
    $region11: #{tpu_custom_call.1} parent=1 // pred_check_branch
      %37 = sbr.rel (0) target = $region13
    $region12: #{tpu_custom_call.1} parent=1 // pred_region
      %39 = dma.done [#allocation3], 256
    $region13: #{tpu_custom_call.1} parent=1 // pred_fallthru
      _
    // Predicated region
    $region14: #{tpu_custom_call.1} parent=1 // pred_check
      _
    $region15: #{tpu_custom_call.1} parent=1 // pred_check_branch
      %41 = sbr.rel (0) target = $region17
    $region16: #{tpu_custom_call.1} parent=1 // pred_region
      %43 = dma.done [#allocation6], 256
    $region17: #{tpu_custom_call.1} parent=1 // pred_fallthru
      _
    %v44 = vld [vmem:[#allocation2] sm:$0xff]
    %v45 = vld [vmem:[#allocation2 + $0x8] sm:$0xff]
    %v46 = vld [vmem:[#allocation5] sm:$0xff]
    %v47 = vld [vmem:[#allocation5 + $0x8] sm:$0xff]
    %vm48 = vcmp.gt.f32.partialorder %v44, %v46
    %vm49 = vcmp.gt.f32.partialorder %v45, %v47
    %v50 = vsel %vm48, 2.0, %v44
    %v51 = vsel %vm49, 2.0, %v45
    %52 = vst [vmem:[#allocation7] sm:$0xff] %v50
    %53 = vst [vmem:[#allocation7 + $0x8] sm:$0xff] %v51
    // Predicated region
    $region18: #{tpu_custom_call.1} parent=1 // pred_check
      _
    $region19: #{tpu_custom_call.1} parent=1 // pred_check_branch
      %55 = sbr.rel (0) target = $region21
    $region20: #{tpu_custom_call.1} parent=1 // pred_region
      %57 = vsyncadd [#allocation4], 0
      %s58 = sshll.u32 [#allocation7], 4
      %s59 = int_to_ptr.vmem [resolvable:$true] %s58
      %s60 = sshll.u32 %s2, 4
      %s61 = int_to_ptr.hbm [resolvable:$true] %s60
      %66 = dma.vmem_to_hbm [thread:$0]  %s59, 256, %s61, [#allocation4], 128, 128, 8
    $region21: #{tpu_custom_call.1} parent=1 // pred_fallthru
      _
    // Predicated region
    $region22: #{tpu_custom_call.1} parent=1 // pred_check
      _
    $region23: #{tpu_custom_call.1} parent=1 // pred_check_branch
      %68 = sbr.rel (0) target = $region25
    $region24: #{tpu_custom_call.1} parent=1 // pred_region
      %70 = dma.done [#allocation4], 256
    $region25: #{tpu_custom_call.1} parent=1 // pred_fallthru
      _
    %71 = vsyncpa [#allocation3], 1
    %72 = vsyncpa [#allocation6], 1
    %73 = vsyncpa [#allocation4], 1

</llo_original>
